<compile_context>
chip_gen: v7x
topology: tpu7x:2x2x1
jax: 0.10.0
libtpu: 0.0.40
codegen_flags: <defaults>
</compile_context>

<pallas_src>
import functools

import jax
import jax.numpy as jnp
from jax import lax
from jax.experimental import pallas as pl
from jax.experimental.pallas import tpu as pltpu

_NEG_BIG = -1e30  # finite "-inf" sentinel (avoids inf arithmetic edge cases)


def _round_up(x, m):
    return (x + m - 1) // m * m


def _split_f32(x):
    """Split f32 -> (hi, lo) bf16 pair with x ~= hi + lo."""
    hi = x.astype(jnp.bfloat16)
    lo = (x - hi.astype(jnp.float32)).astype(jnp.bfloat16)
    return hi, lo


def _dot_f32(a, b, dimension_numbers):
    """f32-accurate contraction via 3 bf16 MXU passes (lo*lo term dropped)."""
    a_hi, a_lo = _split_f32(a)
    b_hi, b_lo = _split_f32(b)
    dot = functools.partial(lax.dot_general,
                            dimension_numbers=dimension_numbers,
                            preferred_element_type=jnp.float32)
    return dot(a_hi, b_hi) + dot(a_hi, b_lo) + dot(a_lo, b_hi)


def _int_power(x, p):
    """x ** p for static integer p via exponentiation-by-squaring."""
    if p == 0:
        return jnp.ones_like(x)
    n, base, result = abs(int(p)), x, None
    while n:
        if n & 1:
            result = base if result is None else result * base
        n >>= 1
        if n:
            base = base * base
    if p < 0:
        result = 1.0 / result
    return result


def _hopfield_kernel(s_ref, xk_ref, xv_ref, bias_ref, o_ref,
                     acc_ref, m_ref, l_ref, *, sep, needs_mask, f32_inputs):
    """One (tq, tk) tile of the score matrix per grid step.

    s_ref   : (tq, Np) query tile
    xk_ref  : (tk, Np) key tile    (rows of X[:-1], beta pre-folded for softmax)
    xv_ref  : (tk, Np) value tile  (rows of X[1:])
    bias_ref: (1, tk) additive column bias (0 valid, -1e30 padded)
    o_ref   : (tq, Np) output tile (written on the last key step)
    acc_ref : (tq, Np) f32 accumulator
    m_ref, l_ref: (tq, 1) f32 running max / running sum (softmax only)
    """
    kv = pl.program_id(1)
    is_softmax = (sep == "softmax")
    is_last = kv == pl.num_programs(1) - 1

    @pl.when(kv == 0)
    def _init():
        acc_ref[...] = jnp.zeros_like(acc_ref)
        if is_softmax:
            m_ref[...] = jnp.full_like(m_ref, _NEG_BIG)
            l_ref[...] = jnp.zeros_like(l_ref)

    qk_dims = (((1,), (1,)), ((), ()))   # contract feature dims: s @ k.T
    pv_dims = (((1,), (0,)), ((), ()))   # standard matmul:        p @ v

    if f32_inputs:
        raw = _dot_f32(s_ref[...], xk_ref[...], qk_dims)
    else:
        raw = lax.dot_general(s_ref[...], xk_ref[...], qk_dims,
                              preferred_element_type=jnp.float32)

    def pv(p):
        if f32_inputs:
            return _dot_f32(p, xv_ref[...], pv_dims)
        return lax.dot_general(p.astype(xv_ref.dtype), xv_ref[...], pv_dims,
                               preferred_element_type=jnp.float32)

    if is_softmax:
        # beta is folded into the keys by the wrapper; padded columns get a
        # -1e30 additive bias (single VPU add) so they vanish from the softmax.
        z = (raw + bias_ref[...]) if needs_mask else raw
        m_prev = m_ref[...]
        m_new = jnp.maximum(m_prev, jnp.max(z, axis=1, keepdims=True))
        alpha = jnp.exp(m_prev - m_new)
        p = jnp.exp(z - m_new)
        l_ref[...] = alpha * l_ref[...] + jnp.sum(p, axis=1, keepdims=True)
        acc_ref[...] = alpha * acc_ref[...] + pv(p)
        m_ref[...] = m_new
    else:
        if sep == "exp":
            # Unshifted exp matches the reference semantics. Padded key columns
            # give exp(0)=1 but their value rows are zero.
            p = jnp.exp(raw)
        else:
            power = int(sep)
            p = _int_power(raw, power)
            if needs_mask and power < 0:
                # padded columns have raw == 0 -> inf; zero them so inf*0 does
                # not turn the accumulator into NaN.
                p = jnp.where(bias_ref[...] == 0.0, p, 0.0)
        acc_ref[...] += pv(p)

    @pl.when(is_last)
    def _finalize():
        if is_softmax:
            # Exact divide: runs once per output tile, so it is essentially free.
            o_ref[...] = (acc_ref[...] / l_ref[...]).astype(o_ref.dtype)
        else:
            o_ref[...] = acc_ref[...].astype(o_ref.dtype)


def _vmem_budget():
    """Per-generation VMEM budget (bytes) with headroom for Mosaic scratch."""
    cap = 64 * 2 ** 20                      # conservative fallback (v7x-sized)
    try:
        cap = int(pltpu.get_tpu_info().vmem_capacity_bytes)
    except Exception:
        pass
    return max(16 * 2 ** 20, int(0.75 * cap))   # ~96 MiB v5e/v6e, ~48 MiB v7x


def _choose_tiles(M, Np, itemsize, budget):
    """Pick (tq, tk): biggest tiles that fit the budget, >=2 q blocks if M>128."""
    def fits(tq, tk):
        dbl = 2                                             # BlockSpec double buffering
        io_tiles = dbl * Np * 2 * (tq + tk) * itemsize      # q,out + k,v tiles
        acc = 4 * tq * Np                                   # f32 accumulator
        splits = 4 * Np * (tq + tk) if itemsize == 4 else 0  # bf16 hi/lo temps
        score = 3 * 4 * tq * tk                             # raw / z / p f32 temps
        return io_tiles + acc + splits + score + (2 << 20) <= budget

    cands = []
    if M <= 128:
        t = _round_up(max(M, 8), 8)
        cands.append((t, t))
    elif M <= 256:
        cands.append((128, 128))   # full 128-wide MXU passes, >=2 query blocks
    else:
        # Prefer large tq (higher arithmetic intensity on streamed K/V) while
        # keeping >=2 query blocks so v7x megacore can use both TensorCores.
        for tq in (512, 256, 128):
            if -(-M // tq) < 2:
                continue
            for tk in (256, 128):
                cands.append((tq, tk))
    # Generic fallbacks for very large Np: shrink tq first, keep K/V lane-dense.
    cands += [(128, 128), (64, 128), (32, 128), (16, 128), (8, 128)]
    for tq, tk in cands:
        if fits(tq, tk):
            return tq, tk
    return 8, 128


def hopfield_forward(X, s, *, sep="softmax", beta=1.0):
    """X: (P, N) stored memories; s: (P-1, N) queries -> (P-1, N)."""
    P, N = X.shape
    M = P - 1
    assert s.shape == (M, N), (s.shape, (M, N))
    if M == 0:
        return jnp.zeros((0, N), s.dtype)

    dtype = s.dtype
    itemsize = jnp.dtype(dtype).itemsize
    f32_inputs = (dtype == jnp.float32)

    Np = _round_up(N, 128)                 # lane-dense output stores
    budget = _vmem_budget()
    tq, tk = _choose_tiles(M, Np, itemsize, budget)
    Mq = _round_up(M, tq)                  # padded query / output rows
    Mk = _round_up(M, tk)                  # padded key / value rows
    needs_mask = (Mk != M)

    keys = X[:-1].astype(dtype)
    vals = X[1:].astype(dtype)
    if sep == "softmax" and float(beta) != 1.0:
        # Fold beta into the keys: one MxN multiply instead of per-step scaling.
        keys = keys * jnp.asarray(beta, dtype=dtype)

    pad_n = Np - N
    sp = jnp.pad(s, ((0, Mq - M), (0, pad_n)))
    xk = jnp.pad(keys, ((0, Mk - M), (0, pad_n)))
    xv = jnp.pad(vals, ((0, Mk - M), (0, pad_n)))
    # Additive column bias: 0 on valid key columns, -1e30 on padded ones.
    bias = jnp.where(jnp.arange(Mk) < M, 0.0, _NEG_BIG).astype(jnp.float32)
    bias = bias.reshape(1, Mk)

    kernel = functools.partial(_hopfield_kernel, sep=sep,
                               needs_mask=needs_mask, f32_inputs=f32_inputs)

    out_padded = pl.pallas_call(
        kernel,
        out_shape=jax.ShapeDtypeStruct((Mq, Np), dtype),
        grid_spec=pltpu.PrefetchScalarGridSpec(
            num_scalar_prefetch=0,
            grid=(Mq // tq, Mk // tk),
            in_specs=[
                pl.BlockSpec((tq, Np), lambda qi, ki: (qi, 0)),   # queries
                pl.BlockSpec((tk, Np), lambda qi, ki: (ki, 0)),   # keys   X[:-1]
                pl.BlockSpec((tk, Np), lambda qi, ki: (ki, 0)),   # values X[1:]
                pl.BlockSpec((1, tk), lambda qi, ki: (0, ki)),    # column bias
            ],
            out_specs=pl.BlockSpec((tq, Np), lambda qi, ki: (qi, 0)),
            scratch_shapes=[
                pltpu.VMEM((tq, Np), jnp.float32),   # accumulator
                pltpu.VMEM((tq, 1), jnp.float32),    # running max (softmax)
                pltpu.VMEM((tq, 1), jnp.float32),    # running sum (softmax)
            ],
        ),
        compiler_params=pltpu.CompilerParams(
            dimension_semantics=("parallel", "arbitrary"),
            vmem_limit_bytes=int(budget),
        ),
    )(sp, xk, xv, bias)

    return out_padded[:M, :N]


class ModernAsymmetricHopfieldNetwork:
    """Forward-only Pallas port of the PyTorch module (train() not needed)."""

    def __init__(self, input_size, sep="linear", beta=1):
        del input_size
        self.sep = sep
        self.beta = beta

    def forward(self, X, s):
        return hopfield_forward(X, s, sep=self.sep, beta=self.beta)

    __call__ = forward


def hopfield_reference(X, s, *, sep="softmax", beta=1.0):
    hp = jax.lax.Precision.HIGHEST
    raw = jnp.matmul(s, X[:-1].T, precision=hp)
    if sep == "exp":
        score = jnp.exp(raw)
    elif sep == "softmax":
        score = jax.nn.softmax(beta * raw, axis=1)
    else:
        score = raw ** int(sep)
    return jnp.matmul(score, X[1:], precision=hp)


if __name__ == "__main__":
    ok = True
    # (P, N): tiny exact-fit case + a multi-tile / padded / masked case.
    for (P, N) in ((9, 32), (321, 48)):
        key = jax.random.PRNGKey(0)
        kx, ks = jax.random.split(key)
        # scale 0.4 keeps exp(raw) well-conditioned for the numerical check
        X = 0.4 * jax.random.normal(kx, (P, N), dtype=jnp.float32)
        s = 0.4 * jax.random.normal(ks, (P - 1, N), dtype=jnp.float32)

        for sep, beta in (("softmax", 0.7), ("exp", 1.0), (2, 1.0), (3, 1.0)):
            out = jax.block_until_ready(
                hopfield_forward(X, s, sep=sep, beta=beta))
            ref = hopfield_reference(X, s, sep=sep, beta=beta)
            err = float(jnp.max(jnp.abs(out - ref)) /
                        (jnp.max(jnp.abs(ref)) + 1e-30))
            if (err > 2e-3) or (not bool(jnp.all(jnp.isfinite(out)))):
                ok = False

    print("KERNEL_OK" if ok else "KERNEL_MISMATCH")
</pallas_src>

<mosaic_0001>
module attributes {stable_mosaic.version = 11 : i64} {
  func.func @_hopfield_kernel(%arg0: i32, %arg1: i32, %arg2: memref<8x128xf32, #tpu.memory_space<vmem>>, %arg3: memref<8x128xf32, #tpu.memory_space<vmem>>, %arg4: memref<8x128xf32, #tpu.memory_space<vmem>>, %arg5: memref<1x8xf32, #tpu.memory_space<vmem>>, %arg6: memref<8x128xf32, #tpu.memory_space<vmem>>, %arg7: memref<8x128xf32, #tpu.memory_space<vmem>>, %arg8: memref<8x1xf32, #tpu.memory_space<vmem>>, %arg9: memref<8x1xf32, #tpu.memory_space<vmem>>) attributes {dimension_semantics = [#tpu.dimension_semantics<parallel>, #tpu.dimension_semantics<arbitrary>], iteration_bounds = array<i64: 1, 1>, scalar_prefetch = 0 : i64, scratch_operands = 3 : i64, tpu.core_type = #tpu.core_type<tc>, window_params = [{transform_indices = @transform_0, window_bounds = array<i64: 8, 128>}, {transform_indices = @transform_1, window_bounds = array<i64: 8, 128>}, {transform_indices = @transform_2, window_bounds = array<i64: 8, 128>}, {transform_indices = @transform_3, window_bounds = array<i64: 1, 8>}, {transform_indices = @transform_4, window_bounds = array<i64: 8, 128>}]} {
    %c0_i32 = arith.constant 0 : i32
    %0 = arith.cmpi eq, %arg1, %c0_i32 : i32
    %c0_i32_0 = arith.constant 0 : i32
    %1 = arith.cmpi eq, %arg1, %c0_i32_0 : i32
    %2 = arith.extui %1 : i1 to i32
    %c0_i32_1 = arith.constant 0 : i32
    %3 = arith.cmpi ne, %2, %c0_i32_1 : i32
    scf.if %3 {
      %cst_27 = arith.constant 0.000000e+00 : f32
      %56 = vector.broadcast %cst_27 : f32 to vector<8x128xf32>
      %c0_28 = arith.constant 0 : index
      %c0_29 = arith.constant 0 : index
      %57 = vector.load %arg7[%c0_28, %c0_29] : memref<8x128xf32, #tpu.memory_space<vmem>>, vector<8x128xf32>
      tpu.vector_store %arg7[%c0_28, %c0_29], %56 {strides = array<i32>} : memref<8x128xf32, #tpu.memory_space<vmem>>, vector<8x128xf32>,
      %cst_30 = arith.constant -1.000000e+30 : f32
      %58 = vector.broadcast %cst_30 : f32 to vector<8x1xf32>
      %c0_31 = arith.constant 0 : index
      %c0_32 = arith.constant 0 : index
      %59 = vector.load %arg8[%c0_31, %c0_32] : memref<8x1xf32, #tpu.memory_space<vmem>>, vector<8x1xf32>
      tpu.vector_store %arg8[%c0_31, %c0_32], %58 {strides = array<i32>} : memref<8x1xf32, #tpu.memory_space<vmem>>, vector<8x1xf32>,
      %cst_33 = arith.constant 0.000000e+00 : f32
      %60 = vector.broadcast %cst_33 : f32 to vector<8x1xf32>
      %c0_34 = arith.constant 0 : index
      %c0_35 = arith.constant 0 : index
      %61 = vector.load %arg9[%c0_34, %c0_35] : memref<8x1xf32, #tpu.memory_space<vmem>>, vector<8x1xf32>
      tpu.vector_store %arg9[%c0_34, %c0_35], %60 {strides = array<i32>} : memref<8x1xf32, #tpu.memory_space<vmem>>, vector<8x1xf32>,
    } else {
    }
    %c0 = arith.constant 0 : index
    %c0_2 = arith.constant 0 : index
    %4 = vector.load %arg2[%c0, %c0_2] : memref<8x128xf32, #tpu.memory_space<vmem>>, vector<8x128xf32>
    %c0_3 = arith.constant 0 : index
    %c0_4 = arith.constant 0 : index
    %5 = vector.load %arg3[%c0_3, %c0_4] : memref<8x128xf32, #tpu.memory_space<vmem>>, vector<8x128xf32>
    %6 = arith.truncf %4 : vector<8x128xf32> to vector<8x128xbf16>
    %7 = arith.extf %6 : vector<8x128xbf16> to vector<8x128xf32>
    %8 = arith.subf %4, %7 : vector<8x128xf32>
    %9 = arith.truncf %8 : vector<8x128xf32> to vector<8x128xbf16>
    %10 = arith.truncf %5 : vector<8x128xf32> to vector<8x128xbf16>
    %11 = arith.extf %10 : vector<8x128xbf16> to vector<8x128xf32>
    %12 = arith.subf %5, %11 : vector<8x128xf32>
    %13 = arith.truncf %12 : vector<8x128xf32> to vector<8x128xbf16>
    %cst = arith.constant dense<0.000000e+00> : vector<8x8xf32>
    %14 = tpu.matmul %6, %10, %cst {dimension_numbers = #tpu.dot_dimension_numbers<[1], [1], [0], [0], [0, 0, 1, 0], [], []>} : vector<8x128xbf16>, vector<8x128xbf16>, vector<8x8xf32> -> vector<8x8xf32>
    %cst_5 = arith.constant dense<0.000000e+00> : vector<8x8xf32>
    %15 = tpu.matmul %6, %13, %cst_5 {dimension_numbers = #tpu.dot_dimension_numbers<[1], [1], [0], [0], [0, 0, 1, 0], [], []>} : vector<8x128xbf16>, vector<8x128xbf16>, vector<8x8xf32> -> vector<8x8xf32>
    %16 = arith.addf %14, %15 : vector<8x8xf32>
    %cst_6 = arith.constant dense<0.000000e+00> : vector<8x8xf32>
    %17 = tpu.matmul %9, %10, %cst_6 {dimension_numbers = #tpu.dot_dimension_numbers<[1], [1], [0], [0], [0, 0, 1, 0], [], []>} : vector<8x128xbf16>, vector<8x128xbf16>, vector<8x8xf32> -> vector<8x8xf32>
    %18 = arith.addf %16, %17 : vector<8x8xf32>
    %c0_7 = arith.constant 0 : index
    %c0_8 = arith.constant 0 : index
    %19 = vector.load %arg8[%c0_7, %c0_8] : memref<8x1xf32, #tpu.memory_space<vmem>>, vector<8x1xf32>
    %cst_9 = arith.constant dense<0xFF800000> : vector<8xf32>
    %20 = vector.multi_reduction <maximumf>, %18, %cst_9 [1] : vector<8x8xf32> to vector<8xf32>
    %21 = vector.shape_cast %20 : vector<8xf32> to vector<8x1xf32>
    %22 = arith.maximumf %19, %21 : vector<8x1xf32>
    %23 = arith.subf %19, %22 : vector<8x1xf32>
    %24 = math.exp %23 : vector<8x1xf32>
    %25 = vector.broadcast %22 : vector<8x1xf32> to vector<8x8xf32>
    %26 = arith.subf %18, %25 : vector<8x8xf32>
    %27 = math.exp %26 : vector<8x8xf32>
    %c0_10 = arith.constant 0 : index
    %c0_11 = arith.constant 0 : index
    %28 = vector.load %arg9[%c0_10, %c0_11] : memref<8x1xf32, #tpu.memory_space<vmem>>, vector<8x1xf32>
    %29 = arith.mulf %24, %28 : vector<8x1xf32>
    %cst_12 = arith.constant dense<0.000000e+00> : vector<8xf32>
    %30 = vector.multi_reduction <add>, %27, %cst_12 [1] : vector<8x8xf32> to vector<8xf32>
    %31 = vector.shape_cast %30 : vector<8xf32> to vector<8x1xf32>
    %32 = arith.addf %29, %31 : vector<8x1xf32>
    %c0_13 = arith.constant 0 : index
    %c0_14 = arith.constant 0 : index
    %33 = vector.load %arg9[%c0_13, %c0_14] : memref<8x1xf32, #tpu.memory_space<vmem>>, vector<8x1xf32>
    tpu.vector_store %arg9[%c0_13, %c0_14], %32 {strides = array<i32>} : memref<8x1xf32, #tpu.memory_space<vmem>>, vector<8x1xf32>,
    %c0_15 = arith.constant 0 : index
    %c0_16 = arith.constant 0 : index
    %34 = vector.load %arg7[%c0_15, %c0_16] : memref<8x128xf32, #tpu.memory_space<vmem>>, vector<8x128xf32>
    %35 = vector.broadcast %24 : vector<8x1xf32> to vector<8x128xf32>
    %36 = arith.mulf %35, %34 : vector<8x128xf32>
    %c0_17 = arith.constant 0 : index
    %c0_18 = arith.constant 0 : index
    %37 = vector.load %arg4[%c0_17, %c0_18] : memref<8x128xf32, #tpu.memory_space<vmem>>, vector<8x128xf32>
    %38 = arith.truncf %27 : vector<8x8xf32> to vector<8x8xbf16>
    %39 = arith.extf %38 : vector<8x8xbf16> to vector<8x8xf32>
    %40 = arith.subf %27, %39 : vector<8x8xf32>
    %41 = arith.truncf %40 : vector<8x8xf32> to vector<8x8xbf16>
    %42 = arith.truncf %37 : vector<8x128xf32> to vector<8x128xbf16>
    %43 = arith.extf %42 : vector<8x128xbf16> to vector<8x128xf32>
    %44 = arith.subf %37, %43 : vector<8x128xf32>
    %45 = arith.truncf %44 : vector<8x128xf32> to vector<8x128xbf16>
    %cst_19 = arith.constant dense<0.000000e+00> : vector<8x128xf32>
    %46 = tpu.matmul %38, %42, %cst_19 {dimension_numbers = #tpu.dot_dimension_numbers<[1], [0], [0], [1], [0, 0, 1, 1], [], []>} : vector<8x8xbf16>, vector<8x128xbf16>, vector<8x128xf32> -> vector<8x128xf32>
    %cst_20 = arith.constant dense<0.000000e+00> : vector<8x128xf32>
    %47 = tpu.matmul %38, %45, %cst_20 {dimension_numbers = #tpu.dot_dimension_numbers<[1], [0], [0], [1], [0, 0, 1, 1], [], []>} : vector<8x8xbf16>, vector<8x128xbf16>, vector<8x128xf32> -> vector<8x128xf32>
    %48 = arith.addf %46, %47 : vector<8x128xf32>
    %cst_21 = arith.constant dense<0.000000e+00> : vector<8x128xf32>
    %49 = tpu.matmul %41, %42, %cst_21 {dimension_numbers = #tpu.dot_dimension_numbers<[1], [0], [0], [1], [0, 0, 1, 1], [], []>} : vector<8x8xbf16>, vector<8x128xbf16>, vector<8x128xf32> -> vector<8x128xf32>
    %50 = arith.addf %48, %49 : vector<8x128xf32>
    %51 = arith.addf %36, %50 : vector<8x128xf32>
    %c0_22 = arith.constant 0 : index
    %c0_23 = arith.constant 0 : index
    %52 = vector.load %arg7[%c0_22, %c0_23] : memref<8x128xf32, #tpu.memory_space<vmem>>, vector<8x128xf32>
    tpu.vector_store %arg7[%c0_22, %c0_23], %51 {strides = array<i32>} : memref<8x128xf32, #tpu.memory_space<vmem>>, vector<8x128xf32>,
    %c0_24 = arith.constant 0 : index
    %c0_25 = arith.constant 0 : index
    %53 = vector.load %arg8[%c0_24, %c0_25] : memref<8x1xf32, #tpu.memory_space<vmem>>, vector<8x1xf32>
    tpu.vector_store %arg8[%c0_24, %c0_25], %22 {strides = array<i32>} : memref<8x1xf32, #tpu.memory_space<vmem>>, vector<8x1xf32>,
    %54 = arith.extui %0 : i1 to i32
    %c0_i32_26 = arith.constant 0 : i32
    %55 = arith.cmpi ne, %54, %c0_i32_26 : i32
    scf.if %55 {
      %c0_27 = arith.constant 0 : index
      %c0_28 = arith.constant 0 : index
      %56 = vector.load %arg7[%c0_27, %c0_28] : memref<8x128xf32, #tpu.memory_space<vmem>>, vector<8x128xf32>
      %c0_29 = arith.constant 0 : index
      %c0_30 = arith.constant 0 : index
      %57 = vector.load %arg9[%c0_29, %c0_30] : memref<8x1xf32, #tpu.memory_space<vmem>>, vector<8x1xf32>
      %58 = vector.broadcast %57 : vector<8x1xf32> to vector<8x128xf32>
      %59 = arith.divf %56, %58 : vector<8x128xf32>
      %c0_31 = arith.constant 0 : index
      %c0_32 = arith.constant 0 : index
      %60 = vector.load %arg6[%c0_31, %c0_32] : memref<8x128xf32, #tpu.memory_space<vmem>>, vector<8x128xf32>
      tpu.vector_store %arg6[%c0_31, %c0_32], %59 {strides = array<i32>} : memref<8x128xf32, #tpu.memory_space<vmem>>, vector<8x128xf32>,
    } else {
    }
    return
  }
  func.func @transform_0(%arg0: i32, %arg1: i32) -> (i32, i32) {
    %c0_i32 = arith.constant 0 : i32
    %c0_i32_0 = arith.constant 0 : i32
    return %arg0, %c0_i32 : i32, i32
  }
  func.func @transform_1(%arg0: i32, %arg1: i32) -> (i32, i32) {
    %c0_i32 = arith.constant 0 : i32
    %c0_i32_0 = arith.constant 0 : i32
    return %arg1, %c0_i32 : i32, i32
  }
  func.func @transform_2(%arg0: i32, %arg1: i32) -> (i32, i32) {
    %c0_i32 = arith.constant 0 : i32
    %c0_i32_0 = arith.constant 0 : i32
    return %arg1, %c0_i32 : i32, i32
  }
  func.func @transform_3(%arg0: i32, %arg1: i32) -> (i32, i32) {
    %c0_i32 = arith.constant 0 : i32
    %c0_i32_0 = arith.constant 0 : i32
    return %c0_i32, %arg1 : i32, i32
  }
  func.func @transform_4(%arg0: i32, %arg1: i32) -> (i32, i32) {
    %c0_i32 = arith.constant 0 : i32
    %c0_i32_0 = arith.constant 0 : i32
    return %arg0, %c0_i32 : i32, i32
  }
}

</mosaic_0001>

<llo_original>
// kernel: tpu_custom_call.1
$region0: #{tpu_custom_call.1}
  #allocation0 [shape = 'u32[]', space=smem, size = 0x4, offset = 0x4, fixed_abs, tag = 'smem constant byte address 0x4 - core index']
  #allocation1 [shape = 'u32[144,128]{1,0:T(1,128)}', space=vmem, size = 0x12000, scoped, tag = 'internal scratch']
  #allocation2 [shape = 'f32[8,128]{1,0:T(8,128)}', space=vmem, size = 0x1000, scoped, tag = 'scratch operand']
  #allocation3 [shape = 'f32[8,1]{1,0:T(8,128)}', space=vmem, size = 0x1000, scoped, tag = 'scratch operand']
  #allocation4 [shape = 'f32[8,1]{1,0:T(8,128)}', space=vmem, size = 0x1000, scoped, tag = 'scratch operand']
  %s0 = inlined_call_operand.hbm [shape: f32[8,128], index: 0, kind: input, shape index: {}]
  %s1 = inlined_call_operand.hbm [shape: f32[8,128], index: 1, kind: input, shape index: {}]
  %s2 = inlined_call_operand.hbm [shape: f32[8,128], index: 2, kind: input, shape index: {}]
  %s3 = inlined_call_operand.vmem [shape: f32[1,8], index: 3, kind: input, shape index: {}]
  %s4 = inlined_call_operand.hbm [shape: f32[8,128], index: 4, kind: output, shape index: {}]
  %s5 = sld [smem:[#allocation0]]
  $region46: #{tpu_custom_call.1} parent=0
    _
  %s7 = ssub.s32 1, %s5
  %s8 = scalar_select 0, %s7, %s5
  $region1: #{tpu_custom_call.1} parent=0
    #allocation5 [shape = 'u8[4096]{0}', space=vmem, size = 0x1000, scoped, tag = 'input window, operand 0, single buffered']
    #allocation6 [shape = 's32[1]{0}', space=sflag, size = 0x4, scoped, tag = 'scoped memory for tpu_custom_call.1']
    #allocation7 [shape = 's32[1]{0}', space=sflag, size = 0x4, scoped, tag = 'scoped memory for tpu_custom_call.1']
    #allocation8 [shape = 'u8[4096]{0}', space=vmem, size = 0x1000, scoped, tag = 'input window, operand 1, single buffered']
    #allocation9 [shape = 's32[1]{0}', space=sflag, size = 0x4, scoped, tag = 'scoped memory for tpu_custom_call.1']
    #allocation10 [shape = 'u8[4096]{0}', space=vmem, size = 0x1000, scoped, tag = 'input window, operand 2, single buffered']
    #allocation11 [shape = 'u8[4096]{0}', space=vmem, size = 0x1000, scoped, tag = 'output window, operand 0, single buffered']
    %9 = vsyncpa [#allocation6], 0
    %10 = vsyncpa [#allocation9], 0
    %11 = vsyncpa [#allocation7], 0
    // Predicated region
    $region2: #{tpu_custom_call.1} parent=1 // pred_check
      _
    $region3: #{tpu_custom_call.1} parent=1 // pred_check_branch
      %13 = sbr.rel (0) target = $region5
    $region4: #{tpu_custom_call.1} parent=1 // pred_region
      %s15 = ssub.s32 128, 128
      %16 = vsyncadd [#allocation6], %s15
      %s18 = sshll.u32 [#allocation5], 4
      %s19 = int_to_ptr.vmem [resolvable:$true] %s18
      %21 = dma.hbm_to_vmem [thread:$0]  %s0, 128, %s19, [#allocation6]
    $region5: #{tpu_custom_call.1} parent=1 // pred_fallthru
      _
    // Predicated region
    $region6: #{tpu_custom_call.1} parent=1 // pred_check
      _
    $region7: #{tpu_custom_call.1} parent=1 // pred_check_branch
      %23 = sbr.rel (0) target = $region9
    $region8: #{tpu_custom_call.1} parent=1 // pred_region
      %s25 = ssub.s32 128, 128
      %26 = vsyncadd [#allocation9], %s25
      %s28 = sshll.u32 [#allocation8], 4
      %s29 = int_to_ptr.vmem [resolvable:$true] %s28
      %31 = dma.hbm_to_vmem [thread:$0]  %s1, 128, %s29, [#allocation9]
    $region9: #{tpu_custom_call.1} parent=1 // pred_fallthru
      _
    // Predicated region
    $region10: #{tpu_custom_call.1} parent=1 // pred_check
      _
    $region11: #{tpu_custom_call.1} parent=1 // pred_check_branch
      %33 = sbr.rel (0) target = $region13
    $region12: #{tpu_custom_call.1} parent=1 // pred_region
      %s35 = ssub.s32 128, 128
      %36 = vsyncadd [#allocation9], %s35
      %s38 = sshll.u32 [#allocation10], 4
      %s39 = int_to_ptr.vmem [resolvable:$true] %s38
      %41 = dma.hbm_to_vmem [thread:$0]  %s2, 128, %s39, [#allocation9]
    $region13: #{tpu_custom_call.1} parent=1 // pred_fallthru
      _
    // Predicated region
    $region14: #{tpu_custom_call.1} parent=1 // pred_check
      _
    $region15: #{tpu_custom_call.1} parent=1 // pred_check_branch
      %43 = sbr.rel (0) target = $region17
    $region16: #{tpu_custom_call.1} parent=1 // pred_region
      _
    $region17: #{tpu_custom_call.1} parent=1 // pred_fallthru
      _
    // Predicated region
    $region18: #{tpu_custom_call.1} parent=1 // pred_check
      _
    $region19: #{tpu_custom_call.1} parent=1 // pred_check_branch
      %45 = sbr.rel (0) target = $region21
    $region20: #{tpu_custom_call.1} parent=1 // pred_region
      %46 = dma.done [#allocation6], 128
    $region21: #{tpu_custom_call.1} parent=1 // pred_fallthru
      _
    // Predicated region
    $region22: #{tpu_custom_call.1} parent=1 // pred_check
      _
    $region23: #{tpu_custom_call.1} parent=1 // pred_check_branch
      %48 = sbr.rel (0) target = $region25
    $region24: #{tpu_custom_call.1} parent=1 // pred_region
      %49 = dma.done [#allocation9], 128
    $region25: #{tpu_custom_call.1} parent=1 // pred_fallthru
      _
    // Predicated region
    $region26: #{tpu_custom_call.1} parent=1 // pred_check
      _
    $region27: #{tpu_custom_call.1} parent=1 // pred_check_branch
      %51 = sbr.rel (0) target = $region29
    $region28: #{tpu_custom_call.1} parent=1 // pred_region
      %52 = dma.done [#allocation9], 128
    $region29: #{tpu_custom_call.1} parent=1 // pred_fallthru
      _
    %p54 = scmp.eq.s32.totalorder 0, 0
    // Predicated region
    $region30: #{tpu_custom_call.1} parent=1 // pred_check
      %p55 = pneg %p54
    $region31: #{tpu_custom_call.1} parent=1 // pred_check_branch
      %57 = sbr.rel (%p55) target = $region33
    $region32: #{tpu_custom_call.1} parent=1 // pred_region
      %58 = vst [vmem:[#allocation2] sm:$0xff] 0.0
      %vm59 = vcmask 7168
      %60 = vst.msk [vmem:[#allocation3] sm:$0xff] %vm59, -1e+30
      %61 = vst.msk [vmem:[#allocation4] sm:$0xff] %vm59, 0.0
    $region33: #{tpu_custom_call.1} parent=1 // pred_fallthru
      _
    %v62 = vld [vmem:[#allocation5] sm:$0xff]
    %v63 = vld [vmem:[#allocation8] sm:$0xff]
    %v64 = vpack.c.bf16 %v62, %v62
    %v65 = vunpack.c.l.bf16 %v64
    %v66 = vsub.f32 %v62, %v65
    %v67 = vpack.c.bf16 %v66, %v66
    %v68 = vpack.c.bf16 %v63, %v63
    %v69 = vunpack.c.l.bf16 %v68
    %v70 = vsub.f32 %v63, %v69
    %v71 = vpack.c.bf16 %v70, %v70
    %72 = vmatprep.subr.bf16.mxu0 0
    %73 = vmatpush1.bf16.xpose.msra.mxu0 %v71
    %74 = vmatprep.subr.bf16.mxu0 0
    %75 = vmatpush1.bf16.xpose.msra.mxu0 0
    %76 = vmatprep.subr.bf16.mxu0 0
    %77 = vmatpush1.bf16.xpose.msra.mxu0 0
    %78 = vmatprep.subr.bf16.mxu0 0
    %79 = vmatpush1.bf16.xpose.msra.mxu0 0
    %80 = vmatprep.subr.bf16.mxu0 0
    %81 = vmatpush1.bf16.xpose.msra.mxu0 0
    %82 = vmatprep.subr.bf16.mxu0 0
    %83 = vmatpush1.bf16.xpose.msra.mxu0 0
    %84 = vmatprep.subr.bf16.mxu0 0
    %85 = vmatpush1.bf16.xpose.msra.mxu0 0
    %86 = vmatprep.subr.bf16.mxu0 0
    %87 = vmatpush1.bf16.xpose.msra.mxu0 0
    %88 = vmatprep.subr.bf16.mxu0 0
    %89 = vmatpush1.bf16.xpose.msra.mxu0 0
    %90 = vmatprep.subr.bf16.mxu0 0
    %91 = vmatpush1.bf16.xpose.msra.mxu0 0
    %92 = vmatprep.subr.bf16.mxu0 0
    %93 = vmatpush1.bf16.xpose.msra.mxu0 0
    %94 = vmatprep.subr.bf16.mxu0 0
    %95 = vmatpush1.bf16.xpose.msra.mxu0 0
    %96 = vmatprep.subr.bf16.mxu0 0
    %97 = vmatpush1.bf16.xpose.msra.mxu0 0
    %98 = vmatprep.subr.bf16.mxu0 0
    %99 = vmatpush1.bf16.xpose.msra.mxu0 0
    %100 = vmatprep.subr.bf16.mxu0 0
    %101 = vmatpush1.bf16.xpose.msra.mxu0 0
    %102 = vmatprep.subr.bf16.mxu0 0
    %103 = vmatpush1.bf16.xpose.msra.mxu0 0
    %104 = vmatprep.mubr.bf16.mxu0 0
    %105 = vmatmul.mubr.bf16.gmra.mrb[0].mxu0 %v64
    %v106 = vpop.f32.mrb[0].mxu0
    %v107 = vadd.f32 0.0, %v106
    %v108 = vpop.f32.mrb[0].mxu0
    %v109 = vpop.f32.mrb[0].mxu0
    %v110 = vpop.f32.mrb[0].mxu0
    %111 = vdwg.mxu0
    %112 = vmatprep.subr.bf16.mxu0 0
    %113 = vmatpush1.bf16.xpose.msra.mxu0 %v68
    %114 = vmatprep.subr.bf16.mxu0 0
    %115 = vmatpush1.bf16.xpose.msra.mxu0 0
    %116 = vmatprep.subr.bf16.mxu0 0
    %117 = vmatpush1.bf16.xpose.msra.mxu0 0
    %118 = vmatprep.subr.bf16.mxu0 0
    %119 = vmatpush1.bf16.xpose.msra.mxu0 0
    %120 = vmatprep.subr.bf16.mxu0 0
    %121 = vmatpush1.bf16.xpose.msra.mxu0 0
    %122 = vmatprep.subr.bf16.mxu0 0
    %123 = vmatpush1.bf16.xpose.msra.mxu0 0
    %124 = vmatprep.subr.bf16.mxu0 0
    %125 = vmatpush1.bf16.xpose.msra.mxu0 0
    %126 = vmatprep.subr.bf16.mxu0 0
    %127 = vmatpush1.bf16.xpose.msra.mxu0 0
    %128 = vmatprep.subr.bf16.mxu0 0
    %129 = vmatpush1.bf16.xpose.msra.mxu0 0
    %130 = vmatprep.subr.bf16.mxu0 0
    %131 = vmatpush1.bf16.xpose.msra.mxu0 0
    %132 = vmatprep.subr.bf16.mxu0 0
    %133 = vmatpush1.bf16.xpose.msra.mxu0 0
    %134 = vmatprep.subr.bf16.mxu0 0
    %135 = vmatpush1.bf16.xpose.msra.mxu0 0
    %136 = vmatprep.subr.bf16.mxu0 0
    %137 = vmatpush1.bf16.xpose.msra.mxu0 0
    %138 = vmatprep.subr.bf16.mxu0 0
    %139 = vmatpush1.bf16.xpose.msra.mxu0 0
    %140 = vmatprep.subr.bf16.mxu0 0
    %141 = vmatpush1.bf16.xpose.msra.mxu0 0
    %142 = vmatprep.subr.bf16.mxu0 0
    %143 = vmatpush1.bf16.xpose.msra.mxu0 0
    %144 = vmatprep.mubr.bf16.mxu0 0
    %145 = vmatmul.mubr.bf16.gmra.mrb[0].mxu0 %v64
    %v146 = vpop.f32.mrb[0].mxu0
    %v147 = vadd.f32 %v107, %v146
    %v148 = vpop.f32.mrb[0].mxu0
    %v149 = vpop.f32.mrb[0].mxu0
    %v150 = vpop.f32.mrb[0].mxu0
    %151 = vdwg.mxu0
    %152 = vmatprep.subr.bf16.mxu0 0
    %153 = vmatpush1.bf16.xpose.msra.mxu0 %v68
    %154 = vmatprep.subr.bf16.mxu0 0
    %155 = vmatpush1.bf16.xpose.msra.mxu0 0
    %156 = vmatprep.subr.bf16.mxu0 0
    %157 = vmatpush1.bf16.xpose.msra.mxu0 0
    %158 = vmatprep.subr.bf16.mxu0 0
    %159 = vmatpush1.bf16.xpose.msra.mxu0 0
    %160 = vmatprep.subr.bf16.mxu0 0
    %161 = vmatpush1.bf16.xpose.msra.mxu0 0
    %162 = vmatprep.subr.bf16.mxu0 0
    %163 = vmatpush1.bf16.xpose.msra.mxu0 0
    %164 = vmatprep.subr.bf16.mxu0 0
    %165 = vmatpush1.bf16.xpose.msra.mxu0 0
    %166 = vmatprep.subr.bf16.mxu0 0
    %167 = vmatpush1.bf16.xpose.msra.mxu0 0
    %168 = vmatprep.subr.bf16.mxu0 0
    %169 = vmatpush1.bf16.xpose.msra.mxu0 0
    %170 = vmatprep.subr.bf16.mxu0 0
    %171 = vmatpush1.bf16.xpose.msra.mxu0 0
    %172 = vmatprep.subr.bf16.mxu0 0
    %173 = vmatpush1.bf16.xpose.msra.mxu0 0
    %174 = vmatprep.subr.bf16.mxu0 0
    %175 = vmatpush1.bf16.xpose.msra.mxu0 0
    %176 = vmatprep.subr.bf16.mxu0 0
    %177 = vmatpush1.bf16.xpose.msra.mxu0 0
    %178 = vmatprep.subr.bf16.mxu0 0
    %179 = vmatpush1.bf16.xpose.msra.mxu0 0
    %180 = vmatprep.subr.bf16.mxu0 0
    %181 = vmatpush1.bf16.xpose.msra.mxu0 0
    %182 = vmatprep.subr.bf16.mxu0 0
    %183 = vmatpush1.bf16.xpose.msra.mxu0 0
    %184 = vmatprep.mubr.bf16.mxu0 0
    %185 = vmatmul.mubr.bf16.gmra.mrb[0].mxu0 %v67
    %v186 = vpop.f32.mrb[0].mxu0
    %v187 = vadd.f32 0.0, %v186
    %v188 = vpop.f32.mrb[0].mxu0
    %v189 = vpop.f32.mrb[0].mxu0
    %v190 = vpop.f32.mrb[0].mxu0
    %191 = vdwg.mxu0
    %v192 = vadd.f32 %v147, %v187
    %v193 = vld [vmem:[#allocation3] sm:$0xff]
    %vm194 = vcmask 64512
    %v195 = vsel %vm194, %v192, -inf
    %196 = vmax.xlane.f32.xlu0 %v195
    %v197 = vpop.xlane.xlu0 %196
    %v198 = vmax.f32 %v193, %v197
    %v199 = vsub.f32 %v193, %v198
    %v200 = vmul.f32 %v199, 1.442695
    %v201 = vpow.pop %v200
    %203 = vset.pattern.permute.xlu0 0
    %204 = vperm.xlu0 %203, %v198
    %v205 = vpop.permute.xlu0 %204
    %v207 = vsub.f32 %v192, %v205
    %v208 = vmul.f32 %v207, 1.442695
    %v209 = vpow.pop %v208
    %v210 = vld [vmem:[#allocation4] sm:$0xff]
    %v211 = vmul.f32 %v201, %v210
    %v212 = vsel %vm194, %v209, 0.0
    %213 = vadd.xlane.f32.xlu0 %v212
    %v214 = vpop.xlane.xlu0 %213
    %v215 = vadd.f32 %v211, %v214
    %vm216 = vcmask 7168
    %217 = vst.msk [vmem:[#allocation4] sm:$0xff] %vm216, %v215
    %v218 = vld [vmem:[#allocation2] sm:$0xff]
    %220 = vset.pattern.permute.xlu0 0
    %221 = vperm.xlu0 %220, %v201
    %v222 = vpop.permute.xlu0 %221
    %v224 = vmul.f32 %v222, %v218
    %v225 = vld [vmem:[#allocation10] sm:$0xff]
    %v226 = vpack.c.bf16 %v209, %v209
    %v227 = vunpack.c.l.bf16 %v226
    %v228 = vsub.f32 %v209, %v227
    %v229 = vpack.c.bf16 %v228, %v228
    %v230 = vpack.c.bf16 %v225, %v225
    %v231 = vunpack.c.l.bf16 %v230
    %v232 = vsub.f32 %v225, %v231
    %v233 = vpack.c.bf16 %v232, %v232
    %v235 = vsel %vm194, %v226, 0
    %vm237 = vcmask 1043456
    %v239 = vsel %vm237, %v233, 0
    %241 = vmatprep.subr.bf16.mxu0 0
    %242 = vmatpush1.bf16.msra.mxu0 %v239
    %243 = vmatprep.subr.bf16.mxu0 0
    %244 = vmatpush1.bf16.msra.mxu0 0
    %245 = vmatprep.subr.bf16.mxu0 0
    %246 = vmatpush1.bf16.msra.mxu0 0
    %247 = vmatprep.subr.bf16.mxu0 0
    %248 = vmatpush1.bf16.msra.mxu0 0
    %249 = vmatprep.subr.bf16.mxu0 0
    %250 = vmatpush1.bf16.msra.mxu0 0
    %251 = vmatprep.subr.bf16.mxu0 0
    %252 = vmatpush1.bf16.msra.mxu0 0
    %253 = vmatprep.subr.bf16.mxu0 0
    %254 = vmatpush1.bf16.msra.mxu0 0
    %255 = vmatprep.subr.bf16.mxu0 0
    %256 = vmatpush1.bf16.msra.mxu0 0
    %257 = vmatprep.subr.bf16.mxu0 0
    %258 = vmatpush1.bf16.msra.mxu0 0
    %259 = vmatprep.subr.bf16.mxu0 0
    %260 = vmatpush1.bf16.msra.mxu0 0
    %261 = vmatprep.subr.bf16.mxu0 0
    %262 = vmatpush1.bf16.msra.mxu0 0
    %263 = vmatprep.subr.bf16.mxu0 0
    %264 = vmatpush1.bf16.msra.mxu0 0
    %265 = vmatprep.subr.bf16.mxu0 0
    %266 = vmatpush1.bf16.msra.mxu0 0
    %267 = vmatprep.subr.bf16.mxu0 0
    %268 = vmatpush1.bf16.msra.mxu0 0
    %269 = vmatprep.subr.bf16.mxu0 0
    %270 = vmatpush1.bf16.msra.mxu0 0
    %271 = vmatprep.subr.bf16.mxu0 0
    %272 = vmatpush1.bf16.msra.mxu0 0
    %273 = vmatprep.mubr.bf16.mxu0 0
    %274 = vmatmul.mubr.bf16.gmra.mrb[0].mxu0 %v235
    %v275 = vpop.f32.mrb[0].mxu0
    %v276 = vadd.f32 0.0, %v275
    %v277 = vpop.f32.mrb[0].mxu0
    %v278 = vpop.f32.mrb[0].mxu0
    %v279 = vpop.f32.mrb[0].mxu0
    %280 = vdwg.mxu0
    %v282 = vsel %vm237, %v230, 0
    %284 = vmatprep.subr.bf16.mxu0 0
    %285 = vmatpush1.bf16.msra.mxu0 %v282
    %286 = vmatprep.subr.bf16.mxu0 0
    %287 = vmatpush1.bf16.msra.mxu0 0
    %288 = vmatprep.subr.bf16.mxu0 0
    %289 = vmatpush1.bf16.msra.mxu0 0
    %290 = vmatprep.subr.bf16.mxu0 0
    %291 = vmatpush1.bf16.msra.mxu0 0
    %292 = vmatprep.subr.bf16.mxu0 0
    %293 = vmatpush1.bf16.msra.mxu0 0
    %294 = vmatprep.subr.bf16.mxu0 0
    %295 = vmatpush1.bf16.msra.mxu0 0
    %296 = vmatprep.subr.bf16.mxu0 0
    %297 = vmatpush1.bf16.msra.mxu0 0
    %298 = vmatprep.subr.bf16.mxu0 0
    %299 = vmatpush1.bf16.msra.mxu0 0
    %300 = vmatprep.subr.bf16.mxu0 0
    %301 = vmatpush1.bf16.msra.mxu0 0
    %302 = vmatprep.subr.bf16.mxu0 0
    %303 = vmatpush1.bf16.msra.mxu0 0
    %304 = vmatprep.subr.bf16.mxu0 0
    %305 = vmatpush1.bf16.msra.mxu0 0
    %306 = vmatprep.subr.bf16.mxu0 0
    %307 = vmatpush1.bf16.msra.mxu0 0
    %308 = vmatprep.subr.bf16.mxu0 0
    %309 = vmatpush1.bf16.msra.mxu0 0
    %310 = vmatprep.subr.bf16.mxu0 0
    %311 = vmatpush1.bf16.msra.mxu0 0
    %312 = vmatprep.subr.bf16.mxu0 0
    %313 = vmatpush1.bf16.msra.mxu0 0
    %314 = vmatprep.subr.bf16.mxu0 0
    %315 = vmatpush1.bf16.msra.mxu0 0
    %316 = vmatprep.mubr.bf16.mxu0 0
    %317 = vmatmul.mubr.bf16.gmra.mrb[0].mxu0 %v235
    %v318 = vpop.f32.mrb[0].mxu0
    %v319 = vadd.f32 %v276, %v318
    %v320 = vpop.f32.mrb[0].mxu0
    %v321 = vpop.f32.mrb[0].mxu0
    %v322 = vpop.f32.mrb[0].mxu0
    %323 = vdwg.mxu0
    %v325 = vsel %vm194, %v229, 0
    %327 = vmatprep.subr.bf16.mxu0 0
    %328 = vmatpush1.bf16.msra.mxu0 %v282
    %329 = vmatprep.subr.bf16.mxu0 0
    %330 = vmatpush1.bf16.msra.mxu0 0
    %331 = vmatprep.subr.bf16.mxu0 0
    %332 = vmatpush1.bf16.msra.mxu0 0
    %333 = vmatprep.subr.bf16.mxu0 0
    %334 = vmatpush1.bf16.msra.mxu0 0
    %335 = vmatprep.subr.bf16.mxu0 0
    %336 = vmatpush1.bf16.msra.mxu0 0
    %337 = vmatprep.subr.bf16.mxu0 0
    %338 = vmatpush1.bf16.msra.mxu0 0
    %339 = vmatprep.subr.bf16.mxu0 0
    %340 = vmatpush1.bf16.msra.mxu0 0
    %341 = vmatprep.subr.bf16.mxu0 0
    %342 = vmatpush1.bf16.msra.mxu0 0
    %343 = vmatprep.subr.bf16.mxu0 0
    %344 = vmatpush1.bf16.msra.mxu0 0
    %345 = vmatprep.subr.bf16.mxu0 0
    %346 = vmatpush1.bf16.msra.mxu0 0
    %347 = vmatprep.subr.bf16.mxu0 0
    %348 = vmatpush1.bf16.msra.mxu0 0
    %349 = vmatprep.subr.bf16.mxu0 0
    %350 = vmatpush1.bf16.msra.mxu0 0
    %351 = vmatprep.subr.bf16.mxu0 0
    %352 = vmatpush1.bf16.msra.mxu0 0
    %353 = vmatprep.subr.bf16.mxu0 0
    %354 = vmatpush1.bf16.msra.mxu0 0
    %355 = vmatprep.subr.bf16.mxu0 0
    %356 = vmatpush1.bf16.msra.mxu0 0
    %357 = vmatprep.subr.bf16.mxu0 0
    %358 = vmatpush1.bf16.msra.mxu0 0
    %359 = vmatprep.mubr.bf16.mxu0 0
    %360 = vmatmul.mubr.bf16.gmra.mrb[0].mxu0 %v325
    %v361 = vpop.f32.mrb[0].mxu0
    %v362 = vadd.f32 0.0, %v361
    %v363 = vpop.f32.mrb[0].mxu0
    %v364 = vpop.f32.mrb[0].mxu0
    %v365 = vpop.f32.mrb[0].mxu0
    %366 = vdwg.mxu0
    %v367 = vadd.f32 %v319, %v362
    %v368 = vadd.f32 %v224, %v367
    %369 = vst [vmem:[#allocation2] sm:$0xff] %v368
    %370 = vst.msk [vmem:[#allocation3] sm:$0xff] %vm216, %v198
    // Predicated region
    $region34: #{tpu_custom_call.1} parent=1 // pred_check
      %p371 = pneg %p54
    $region35: #{tpu_custom_call.1} parent=1 // pred_check_branch
      %373 = sbr.rel (%p371) target = $region37
    $region36: #{tpu_custom_call.1} parent=1 // pred_region
      %v374 = vld [vmem:[#allocation2] sm:$0xff]
      %v375 = vld [vmem:[#allocation4] sm:$0xff]
      %377 = vset.pattern.permute.xlu0 0
      %378 = vperm.xlu0 %377, %v375
      %v379 = vpop.permute.xlu0 %378
      %v381 = vrcp.pop %v379
      %v382 = vmul.f32 %v374, %v381
      %383 = vst [vmem:[#allocation11] sm:$0xff] %v382
    $region37: #{tpu_custom_call.1} parent=1 // pred_fallthru
      _
    // Predicated region
    $region38: #{tpu_custom_call.1} parent=1 // pred_check
      _
    $region39: #{tpu_custom_call.1} parent=1 // pred_check_branch
      %385 = sbr.rel (0) target = $region41
    $region40: #{tpu_custom_call.1} parent=1 // pred_region
      %s387 = ssub.s32 128, 128
      %388 = vsyncadd [#allocation7], %s387
      %s390 = sshll.u32 [#allocation11], 4
      %s391 = int_to_ptr.vmem [resolvable:$true] %s390
      %393 = dma.vmem_to_hbm [thread:$0]  %s391, 128, %s4, [#allocation7]
    $region41: #{tpu_custom_call.1} parent=1 // pred_fallthru
      _
    // Predicated region
    $region42: #{tpu_custom_call.1} parent=1 // pred_check
      _
    $region43: #{tpu_custom_call.1} parent=1 // pred_check_branch
      %395 = sbr.rel (0) target = $region45
    $region44: #{tpu_custom_call.1} parent=1 // pred_region
      %396 = dma.done [#allocation7], 128
    $region45: #{tpu_custom_call.1} parent=1 // pred_fallthru
      _
    %397 = vsyncpa [#allocation6], 1
    %398 = vsyncpa [#allocation9], 1
    %399 = vsyncpa [#allocation7], 1

</llo_original>
